<compile_context>
chip_gen: v7x
topology: tpu7x:2x2x1
jax: 0.10.0
libtpu: 0.0.40
codegen_flags: <defaults>
</compile_context>

<pallas_src>
import functools

import jax
import jax.numpy as jnp
from jax import lax
from jax.experimental import pallas as pl
from jax.experimental.pallas import tpu as pltpu

LN_EPS = 1e-5  # PyTorch nn.LayerNorm default


def _layernorm(h, gamma, beta):
    mean = jnp.mean(h, axis=-1, keepdims=True)
    cent = h - mean
    var = jnp.mean(cent * cent, axis=-1, keepdims=True)
    return cent * lax.rsqrt(var + LN_EPS) * gamma + beta


def actor_kernel(x_ref, w1_ref, w2_ref, wh_ref, vec_ref, out_ref,
                 *, fc1, fc2, nh):
    # Hoist every operand read once (no repeated ref reads / broadcasts).
    x = x_ref[...]
    w1 = w1_ref[...]
    w2 = w2_ref[...]
    wh = wh_ref[...]
    b1 = vec_ref[0:1, :fc1]
    g1 = vec_ref[1:2, :fc1]
    be1 = vec_ref[2:3, :fc1]
    b2 = vec_ref[3:4, :fc2]
    g2 = vec_ref[4:5, :fc2]
    be2 = vec_ref[5:6, :fc2]
    bh = vec_ref[6:7, :nh]
    sig_mask = vec_ref[7:8, :nh] > 0.5   # 1.0 in the log_std columns

    def mm(a, b):
        # Weights arrive pre-cast (f32 or bf16) from the wrapper; only the
        # activation needs an in-register cast.  f32 accumulation on the MXU.
        return jnp.dot(a.astype(b.dtype), b, preferred_element_type=jnp.float32)

    # fc1 -> LayerNorm -> ReLU   (elementwise chain stays f32)
    h = mm(x, w1) + b1
    h = jnp.maximum(_layernorm(h, g1, be1), 0.0)

    # fc2 -> LayerNorm -> ReLU
    h = mm(h, w2) + b2
    h = jnp.maximum(_layernorm(h, g2, be2), 0.0)

    # Fused heads: columns [0, n_act) = mu, [n_act, 2*n_act) = log_std.
    heads = mm(h, wh) + bh
    sigma = jnp.exp(jnp.clip(heads, -20.0, 2.0))   # exp runs on the idle EUP
    out_ref[...] = jnp.where(sig_mask, sigma, heads)


def _round_up(x, m):
    return (x + m - 1) // m * m


def _batch_tiling(B, tb_max, granule):
    """Pick (tile_rows, padded_B).

    Goals: big tiles (amortize per-step overhead), >= 2 grid steps once
    B >= 256 (v7x megacore), and no jnp.pad copy unless unavoidable.
    """
    if B < 256:
        return B, B                              # latency path: single step
    n_min = max(2, pl.cdiv(B, tb_max))           # at least 2 grid steps
    if B % granule == 0:
        cap = max(granule, (min(tb_max, B // n_min) // granule) * granule)
        best = 0
        for tb in range(cap, granule - 1, -granule):
            if B % tb == 0:
                best = tb
                break
        if best * 2 >= cap:                      # divisor close to ideal: no pad
            return best, B
    tb = _round_up(pl.cdiv(B, n_min), granule)   # near-even split, minimal pad
    return tb, pl.cdiv(B, tb) * tb


def _vmem_limit_bytes(tb, in_dim, fc1, fc2, nh, act_itemsize):
    """Raise the scoped-VMEM limit only when the footprint needs it."""
    def tile(rows, cols, itemsize):
        return _round_up(rows, 8) * _round_up(cols, 128) * itemsize

    est = (2 * tile(tb, in_dim, act_itemsize)             # x, double-buffered
           + 2 * tile(tb, nh, 4)                          # out, double-buffered
           + 2 * (tile(in_dim, fc1, act_itemsize)         # resident weights
                  + tile(fc1, fc2, act_itemsize)
                  + tile(fc2, nh, act_itemsize)
                  + tile(8, max(fc1, fc2, nh), 4))
           + 4 * tile(tb, max(fc1, fc2), 4))               # live f32 intermediates
    if est <= 12 << 20:        # comfortably inside every chip's scoped default
        return None
    return int(min(max(est * 3 // 2, 32 << 20), 100 << 20))


@functools.partial(jax.jit, static_argnames=("use_bf16", "tb_max"))
def actor_forward(state, packed, *, use_bf16=False, tb_max=4096):
    """state: [B, input_dims*n_agents] -> (mu, sigma), each [B, n_actions*n_agents]."""
    B, in_dim = state.shape
    w1, w2, wh, vec = packed["w1"], packed["w2"], packed["wh"], packed["vec"]
    fc1 = w1.shape[1]
    fc2 = w2.shape[1]
    nh = wh.shape[1]            # 2 * (n_actions * n_agents)
    n_act = nh // 2

    x = state
    if use_bf16:
        # Pre-cast *before* pallas_call so the DMA streams bf16 bytes.
        x = x.astype(jnp.bfloat16)
        w1 = w1.astype(jnp.bfloat16)
        w2 = w2.astype(jnp.bfloat16)
        wh = wh.astype(jnp.bfloat16)

    granule = 16 if use_bf16 else 8
    tb, b_pad = _batch_tiling(B, tb_max, granule)
    if b_pad != B:
        x = jnp.pad(x, ((0, b_pad - B), (0, 0)))   # rare fallback path
    grid = (b_pad // tb,)

    kernel = functools.partial(actor_kernel, fc1=fc1, fc2=fc2, nh=nh)
    const = lambda i: (0, 0)    # weights / packed vectors stay resident

    itemsize = x.dtype.itemsize
    cost = pl.CostEstimate(
        flops=2 * b_pad * (in_dim * fc1 + fc1 * fc2 + fc2 * nh),
        transcendentals=b_pad * (nh + 2),
        bytes_accessed=(x.size * itemsize + w1.size * itemsize
                        + w2.size * itemsize + wh.size * itemsize
                        + vec.size * 4 + b_pad * nh * 4),
    )

    out = pl.pallas_call(
        kernel,
        out_shape=jax.ShapeDtypeStruct((b_pad, nh), jnp.float32),
        grid=grid,
        in_specs=[
            pl.BlockSpec((tb, in_dim), lambda i: (i, 0)),   # streamed activations
            pl.BlockSpec((in_dim, fc1), const),             # w1
            pl.BlockSpec((fc1, fc2), const),                # w2
            pl.BlockSpec((fc2, nh), const),                 # fused head weight
            pl.BlockSpec(vec.shape, const),                 # packed vectors + mask
        ],
        out_specs=pl.BlockSpec((tb, nh), lambda i: (i, 0)),
        compiler_params=pltpu.CompilerParams(
            dimension_semantics=("parallel",),
            vmem_limit_bytes=_vmem_limit_bytes(tb, in_dim, fc1, fc2, nh, itemsize)),
        cost_estimate=cost,
    )(x, w1, w2, wh, vec)

    out = out[:B]
    return out[:, :n_act], out[:, n_act:]


def init_params(key, input_dims, fc1_dims, fc2_dims, n_actions):
    """Deterministic init mirroring the module's __init__ (uniform ranges)."""
    ks = jax.random.split(key, 8)
    f1 = 1.0 / jnp.sqrt(fc1_dims)   # = 1/sqrt(fc1.weight.size()[0])
    f2 = 1.0 / jnp.sqrt(fc2_dims)   # = 1/sqrt(fc2.weight.size()[0])
    f3 = 0.003
    f4 = 0.003

    def u(k, shape, bound):
        return jax.random.uniform(k, shape, jnp.float32, -bound, bound)

    return {
        # weights stored as [in, out] (transposed PyTorch layout)
        "w1": u(ks[0], (input_dims, fc1_dims), f1),
        "b1": u(ks[1], (1, fc1_dims), f1),
        "g1": jnp.ones((1, fc1_dims), jnp.float32),    # LayerNorm weight
        "be1": jnp.zeros((1, fc1_dims), jnp.float32),  # LayerNorm bias
        "w2": u(ks[2], (fc1_dims, fc2_dims), f2),
        "b2": u(ks[3], (1, fc2_dims), f2),
        "g2": jnp.ones((1, fc2_dims), jnp.float32),
        "be2": jnp.zeros((1, fc2_dims), jnp.float32),
        "wmu": u(ks[4], (fc2_dims, n_actions), f3),
        "bmu": u(ks[5], (1, n_actions), f3),
        "wsg": u(ks[6], (fc2_dims, n_actions), f4),
        "bsg": u(ks[7], (1, n_actions), f4),
    }


def pack_params(p):
    """Pack for the kernel: fused head weight + one (8, max_N) vector slab."""
    fc1 = p["w1"].shape[1]
    fc2 = p["w2"].shape[1]
    n_act = p["wmu"].shape[1]
    nh = 2 * n_act
    width = max(fc1, fc2, nh)

    def row(v):
        return jnp.pad(v, ((0, 0), (0, width - v.shape[1])))

    sig_mask = jnp.concatenate(
        [jnp.zeros((1, n_act), jnp.float32), jnp.ones((1, n_act), jnp.float32)],
        axis=1)
    vec = jnp.concatenate([
        row(p["b1"]), row(p["g1"]), row(p["be1"]),
        row(p["b2"]), row(p["g2"]), row(p["be2"]),
        row(jnp.concatenate([p["bmu"], p["bsg"]], axis=1)),
        row(sig_mask),
    ], axis=0)
    return {
        "w1": p["w1"],
        "w2": p["w2"],
        "wh": jnp.concatenate([p["wmu"], p["wsg"]], axis=1),
        "vec": vec,
    }


def actor_forward_ref(state, p):
    """Pure-JAX reference (mirrors the PyTorch forward)."""
    h = state @ p["w1"] + p["b1"]
    h = jnp.maximum(_layernorm(h, p["g1"], p["be1"]), 0.0)
    h = h @ p["w2"] + p["b2"]
    h = jnp.maximum(_layernorm(h, p["g2"], p["be2"]), 0.0)
    mu = h @ p["wmu"] + p["bmu"]
    log_std = jnp.clip(h @ p["wsg"] + p["bsg"], -20.0, 2.0)
    return mu, jnp.exp(log_std)


if __name__ == "__main__":
    # Small shapes consistent with the module:
    # input_dims(per agent)=8, n_agents=2 -> input 16; fc1=32, fc2=32;
    # n_actions(per agent)=4, n_agents=2 -> 8 actions.
    input_dims, n_agents = 8, 2
    fc1_dims, fc2_dims = 32, 32
    n_actions = 4

    in_dim = input_dims * n_agents      # 16
    act_dim = n_actions * n_agents      # 8

    key = jax.random.PRNGKey(0)
    pkey, skey, bkey = jax.random.split(key, 3)
    params = init_params(pkey, in_dim, fc1_dims, fc2_dims, act_dim)
    packed = pack_params(params)

    # 1) Small-B latency path (single grid step), f32: exact match vs reference.
    batch = 8
    state = jax.random.normal(skey, (batch, in_dim), jnp.float32)
    mu, sigma = actor_forward(state, packed)
    jax.block_until_ready((mu, sigma))
    mu_ref, sigma_ref = actor_forward_ref(state, params)
    assert mu.shape == (batch, act_dim) and sigma.shape == (batch, act_dim)
    assert jnp.allclose(mu, mu_ref, atol=1e-5, rtol=1e-5)
    assert jnp.allclose(sigma, sigma_ref, atol=1e-5, rtol=1e-5)

    # 2) Large-B throughput path: multi-step parallel grid (tb=512 x 2 steps,
    #    no padding), f32.
    big = 1024
    state_b = jax.random.normal(bkey, (big, in_dim), jnp.float32)
    mu_b, sigma_b = actor_forward(state_b, packed)
    jax.block_until_ready((mu_b, sigma_b))
    mu_br, sigma_br = actor_forward_ref(state_b, params)
    assert mu_b.shape == (big, act_dim) and sigma_b.shape == (big, act_dim)
    assert jnp.allclose(mu_b, mu_br, atol=1e-5, rtol=1e-5)
    assert jnp.allclose(sigma_b, sigma_br, atol=1e-5, rtol=1e-5)

    # 3) bf16-DMA / bf16-MXU path (f32 accumulation): looser tolerance.
    mu_h, sigma_h = actor_forward(state_b, packed, use_bf16=True)
    jax.block_until_ready((mu_h, sigma_h))
    assert jnp.all(jnp.isfinite(mu_h)) and jnp.all(jnp.isfinite(sigma_h))
    assert jnp.allclose(mu_h, mu_br, atol=1e-1, rtol=1e-1)
    assert jnp.allclose(sigma_h, sigma_br, atol=1e-1, rtol=1e-1)

    # TODO(synk): sample_normal (Normal rsample / tanh squash / log_prob),
    # checkpoint I/O and the Adam optimizer are not part of forward(); they
    # would be the natural extra work to fuse into this call for small-B
    # latency, per the review.
    print("KERNEL_OK")
</pallas_src>

<mosaic_0001>
module attributes {stable_mosaic.version = 11 : i64} {
  func.func @actor_kernel(%arg0: i32, %arg1: memref<8x16xf32, #tpu.memory_space<vmem>>, %arg2: memref<16x32xf32, #tpu.memory_space<vmem>>, %arg3: memref<32x32xf32, #tpu.memory_space<vmem>>, %arg4: memref<32x16xf32, #tpu.memory_space<vmem>>, %arg5: memref<8x32xf32, #tpu.memory_space<vmem>>, %arg6: memref<8x16xf32, #tpu.memory_space<vmem>>) attributes {dimension_semantics = [#tpu.dimension_semantics<parallel>], iteration_bounds = array<i64: 1>, scalar_prefetch = 0 : i64, scratch_operands = 0 : i64, tpu.core_type = #tpu.core_type<tc>, window_params = [{transform_indices = @transform_0, window_bounds = array<i64: 8, 16>}, {pipeline_mode = #tpu.pipeline_mode<synchronous>, transform_indices = @transform_1, window_bounds = array<i64: 16, 32>}, {pipeline_mode = #tpu.pipeline_mode<synchronous>, transform_indices = @transform_2, window_bounds = array<i64: 32, 32>}, {pipeline_mode = #tpu.pipeline_mode<synchronous>, transform_indices = @transform_3, window_bounds = array<i64: 32, 16>}, {pipeline_mode = #tpu.pipeline_mode<synchronous>, transform_indices = @transform_4, window_bounds = array<i64: 8, 32>}, {transform_indices = @transform_5, window_bounds = array<i64: 8, 16>}]} {
    %c0 = arith.constant 0 : index
    %c0_0 = arith.constant 0 : index
    %0 = vector.load %arg1[%c0, %c0_0] : memref<8x16xf32, #tpu.memory_space<vmem>>, vector<8x16xf32>
    %c0_1 = arith.constant 0 : index
    %c0_2 = arith.constant 0 : index
    %1 = vector.load %arg2[%c0_1, %c0_2] : memref<16x32xf32, #tpu.memory_space<vmem>>, vector<16x32xf32>
    %c0_3 = arith.constant 0 : index
    %c0_4 = arith.constant 0 : index
    %2 = vector.load %arg3[%c0_3, %c0_4] : memref<32x32xf32, #tpu.memory_space<vmem>>, vector<32x32xf32>
    %c0_5 = arith.constant 0 : index
    %c0_6 = arith.constant 0 : index
    %3 = vector.load %arg4[%c0_5, %c0_6] : memref<32x16xf32, #tpu.memory_space<vmem>>, vector<32x16xf32>
    %c0_7 = arith.constant 0 : index
    %c0_8 = arith.constant 0 : index
    %4 = vector.load %arg5[%c0_7, %c0_8] : memref<8x32xf32, #tpu.memory_space<vmem>>, vector<1x32xf32>
    %c1 = arith.constant 1 : index
    %c0_9 = arith.constant 0 : index
    %5 = vector.load %arg5[%c1, %c0_9] : memref<8x32xf32, #tpu.memory_space<vmem>>, vector<1x32xf32>
    %c2 = arith.constant 2 : index
    %c0_10 = arith.constant 0 : index
    %6 = vector.load %arg5[%c2, %c0_10] : memref<8x32xf32, #tpu.memory_space<vmem>>, vector<1x32xf32>
    %c3 = arith.constant 3 : index
    %c0_11 = arith.constant 0 : index
    %7 = vector.load %arg5[%c3, %c0_11] : memref<8x32xf32, #tpu.memory_space<vmem>>, vector<1x32xf32>
    %c4 = arith.constant 4 : index
    %c0_12 = arith.constant 0 : index
    %8 = vector.load %arg5[%c4, %c0_12] : memref<8x32xf32, #tpu.memory_space<vmem>>, vector<1x32xf32>
    %c5 = arith.constant 5 : index
    %c0_13 = arith.constant 0 : index
    %9 = vector.load %arg5[%c5, %c0_13] : memref<8x32xf32, #tpu.memory_space<vmem>>, vector<1x32xf32>
    %c6 = arith.constant 6 : index
    %c0_14 = arith.constant 0 : index
    %10 = vector.load %arg5[%c6, %c0_14] : memref<8x32xf32, #tpu.memory_space<vmem>>, vector<1x16xf32>
    %c7 = arith.constant 7 : index
    %c0_15 = arith.constant 0 : index
    %11 = vector.load %arg5[%c7, %c0_15] : memref<8x32xf32, #tpu.memory_space<vmem>>, vector<1x16xf32>
    %cst = arith.constant 5.000000e-01 : f32
    %12 = vector.broadcast %cst : f32 to vector<1x16xf32>
    %13 = arith.cmpf ogt, %11, %12 : vector<1x16xf32>
    %cst_16 = arith.constant dense<0.000000e+00> : vector<8x32xf32>
    %14 = tpu.matmul %0, %1, %cst_16 {dimension_numbers = #tpu.dot_dimension_numbers<[1], [0], [0], [1], [0, 0, 1, 1], [], []>} : vector<8x16xf32>, vector<16x32xf32>, vector<8x32xf32> -> vector<8x32xf32>
    %15 = vector.broadcast %4 : vector<1x32xf32> to vector<8x32xf32>
    %16 = arith.addf %14, %15 : vector<8x32xf32>
    %cst_17 = arith.constant dense<0.000000e+00> : vector<8xf32>
    %17 = vector.multi_reduction <add>, %16, %cst_17 [1] : vector<8x32xf32> to vector<8xf32>
    %18 = vector.shape_cast %17 : vector<8xf32> to vector<8x1xf32>
    %cst_18 = arith.constant 3.200000e+01 : f32
    %19 = vector.broadcast %cst_18 : f32 to vector<8x1xf32>
    %20 = arith.divf %18, %19 : vector<8x1xf32>
    %21 = vector.broadcast %20 : vector<8x1xf32> to vector<8x32xf32>
    %22 = arith.subf %16, %21 : vector<8x32xf32>
    %23 = arith.mulf %22, %22 : vector<8x32xf32>
    %cst_19 = arith.constant dense<0.000000e+00> : vector<8xf32>
    %24 = vector.multi_reduction <add>, %23, %cst_19 [1] : vector<8x32xf32> to vector<8xf32>
    %25 = vector.shape_cast %24 : vector<8xf32> to vector<8x1xf32>
    %cst_20 = arith.constant 3.200000e+01 : f32
    %26 = vector.broadcast %cst_20 : f32 to vector<8x1xf32>
    %27 = arith.divf %25, %26 : vector<8x1xf32>
    %cst_21 = arith.constant 9.99999974E-6 : f32
    %28 = vector.broadcast %cst_21 : f32 to vector<8x1xf32>
    %29 = arith.addf %27, %28 : vector<8x1xf32>
    %30 = math.rsqrt %29 : vector<8x1xf32>
    %31 = vector.broadcast %30 : vector<8x1xf32> to vector<8x32xf32>
    %32 = arith.mulf %22, %31 : vector<8x32xf32>
    %33 = vector.broadcast %5 : vector<1x32xf32> to vector<8x32xf32>
    %34 = arith.mulf %32, %33 : vector<8x32xf32>
    %35 = vector.broadcast %6 : vector<1x32xf32> to vector<8x32xf32>
    %36 = arith.addf %34, %35 : vector<8x32xf32>
    %cst_22 = arith.constant 0.000000e+00 : f32
    %37 = vector.broadcast %cst_22 : f32 to vector<8x32xf32>
    %38 = arith.maximumf %36, %37 : vector<8x32xf32>
    %cst_23 = arith.constant dense<0.000000e+00> : vector<8x32xf32>
    %39 = tpu.matmul %38, %2, %cst_23 {dimension_numbers = #tpu.dot_dimension_numbers<[1], [0], [0], [1], [0, 0, 1, 1], [], []>} : vector<8x32xf32>, vector<32x32xf32>, vector<8x32xf32> -> vector<8x32xf32>
    %40 = vector.broadcast %7 : vector<1x32xf32> to vector<8x32xf32>
    %41 = arith.addf %39, %40 : vector<8x32xf32>
    %cst_24 = arith.constant dense<0.000000e+00> : vector<8xf32>
    %42 = vector.multi_reduction <add>, %41, %cst_24 [1] : vector<8x32xf32> to vector<8xf32>
    %43 = vector.shape_cast %42 : vector<8xf32> to vector<8x1xf32>
    %cst_25 = arith.constant 3.200000e+01 : f32
    %44 = vector.broadcast %cst_25 : f32 to vector<8x1xf32>
    %45 = arith.divf %43, %44 : vector<8x1xf32>
    %46 = vector.broadcast %45 : vector<8x1xf32> to vector<8x32xf32>
    %47 = arith.subf %41, %46 : vector<8x32xf32>
    %48 = arith.mulf %47, %47 : vector<8x32xf32>
    %cst_26 = arith.constant dense<0.000000e+00> : vector<8xf32>
    %49 = vector.multi_reduction <add>, %48, %cst_26 [1] : vector<8x32xf32> to vector<8xf32>
    %50 = vector.shape_cast %49 : vector<8xf32> to vector<8x1xf32>
    %cst_27 = arith.constant 3.200000e+01 : f32
    %51 = vector.broadcast %cst_27 : f32 to vector<8x1xf32>
    %52 = arith.divf %50, %51 : vector<8x1xf32>
    %cst_28 = arith.constant 9.99999974E-6 : f32
    %53 = vector.broadcast %cst_28 : f32 to vector<8x1xf32>
    %54 = arith.addf %52, %53 : vector<8x1xf32>
    %55 = math.rsqrt %54 : vector<8x1xf32>
    %56 = vector.broadcast %55 : vector<8x1xf32> to vector<8x32xf32>
    %57 = arith.mulf %47, %56 : vector<8x32xf32>
    %58 = vector.broadcast %8 : vector<1x32xf32> to vector<8x32xf32>
    %59 = arith.mulf %57, %58 : vector<8x32xf32>
    %60 = vector.broadcast %9 : vector<1x32xf32> to vector<8x32xf32>
    %61 = arith.addf %59, %60 : vector<8x32xf32>
    %cst_29 = arith.constant 0.000000e+00 : f32
    %62 = vector.broadcast %cst_29 : f32 to vector<8x32xf32>
    %63 = arith.maximumf %61, %62 : vector<8x32xf32>
    %cst_30 = arith.constant dense<0.000000e+00> : vector<8x16xf32>
    %64 = tpu.matmul %63, %3, %cst_30 {dimension_numbers = #tpu.dot_dimension_numbers<[1], [0], [0], [1], [0, 0, 1, 1], [], []>} : vector<8x32xf32>, vector<32x16xf32>, vector<8x16xf32> -> vector<8x16xf32>
    %65 = vector.broadcast %10 : vector<1x16xf32> to vector<8x16xf32>
    %66 = arith.addf %64, %65 : vector<8x16xf32>
    %cst_31 = arith.constant -2.000000e+01 : f32
    %cst_32 = arith.constant 2.000000e+00 : f32
    %67 = vector.broadcast %cst_31 : f32 to vector<8x16xf32>
    %68 = arith.maximumf %67, %66 : vector<8x16xf32>
    %69 = vector.broadcast %cst_32 : f32 to vector<8x16xf32>
    %70 = arith.minimumf %69, %68 : vector<8x16xf32>
    %71 = math.exp %70 : vector<8x16xf32>
    %72 = vector.shape_cast %13 : vector<1x16xi1> to vector<1x16xi1>
    %73 = vector.broadcast %72 : vector<1x16xi1> to vector<8x16xi1>
    %74 = arith.select %73, %71, %66 : vector<8x16xi1>, vector<8x16xf32>
    %c0_33 = arith.constant 0 : index
    %c0_34 = arith.constant 0 : index
    %75 = vector.load %arg6[%c0_33, %c0_34] : memref<8x16xf32, #tpu.memory_space<vmem>>, vector<8x16xf32>
    tpu.vector_store %arg6[%c0_33, %c0_34], %74 {strides = array<i32>} : memref<8x16xf32, #tpu.memory_space<vmem>>, vector<8x16xf32>,
    return
  }
  func.func @transform_0(%arg0: i32) -> (i32, i32) {
    %c0_i32 = arith.constant 0 : i32
    %c0_i32_0 = arith.constant 0 : i32
    return %arg0, %c0_i32 : i32, i32
  }
  func.func @transform_1(%arg0: i32) -> (i32, i32) {
    %c0_i32 = arith.constant 0 : i32
    %c0_i32_0 = arith.constant 0 : i32
    %c0_i32_1 = arith.constant 0 : i32
    return %c0_i32, %c0_i32_0 : i32, i32
  }
  func.func @transform_2(%arg0: i32) -> (i32, i32) {
    %c0_i32 = arith.constant 0 : i32
    %c0_i32_0 = arith.constant 0 : i32
    %c0_i32_1 = arith.constant 0 : i32
    return %c0_i32, %c0_i32_0 : i32, i32
  }
  func.func @transform_3(%arg0: i32) -> (i32, i32) {
    %c0_i32 = arith.constant 0 : i32
    %c0_i32_0 = arith.constant 0 : i32
    %c0_i32_1 = arith.constant 0 : i32
    return %c0_i32, %c0_i32_0 : i32, i32
  }
  func.func @transform_4(%arg0: i32) -> (i32, i32) {
    %c0_i32 = arith.constant 0 : i32
    %c0_i32_0 = arith.constant 0 : i32
    %c0_i32_1 = arith.constant 0 : i32
    return %c0_i32, %c0_i32_0 : i32, i32
  }
  func.func @transform_5(%arg0: i32) -> (i32, i32) {
    %c0_i32 = arith.constant 0 : i32
    %c0_i32_0 = arith.constant 0 : i32
    return %arg0, %c0_i32 : i32, i32
  }
}

</mosaic_0001>

<llo_original>
// kernel: actor_forward.1
$region0: #{actor_forward.1}
  #allocation0 [shape = 'u32[]', space=smem, size = 0x4, offset = 0x4, fixed_abs, tag = 'smem constant byte address 0x4 - core index']
  #allocation1 [shape = 'u32[144,128]{1,0:T(1,128)}', space=vmem, size = 0x12000, scoped, tag = 'internal scratch']
  %s0 = inlined_call_operand.vmem [shape: f32[8,16], index: 0, kind: input, shape index: {}]
  %s1 = inlined_call_operand.vmem [shape: f32[16,32], index: 1, kind: input, shape index: {}]
  %s2 = inlined_call_operand.vmem [shape: f32[32,32], index: 2, kind: input, shape index: {}]
  %s3 = inlined_call_operand.vmem [shape: f32[32,16], index: 3, kind: input, shape index: {}]
  %s4 = inlined_call_operand.hbm [shape: f32[8,32], index: 4, kind: input, shape index: {}]
  %s5 = inlined_call_operand.vmem [shape: f32[8,16], index: 5, kind: output, shape index: {}]
  %s6 = sld [smem:[#allocation0]]
  $region34: #{actor_forward.1} parent=0
    _
  %s8 = ssub.s32 1, %s6
  %s9 = scalar_select 0, %s8, %s6
  $region1: #{actor_forward.1} parent=0
    #allocation2 [shape = 'u8[4096]{0}', space=vmem, size = 0x1000, scoped, tag = 'input window, operand 4, single buffered']
    #allocation3 [shape = 's32[1]{0}', space=sflag, size = 0x4, scoped, tag = 'scoped memory for actor_forward.1']
    %10 = vsyncpa [#allocation3], 0
    // Predicated region
    $region2: #{actor_forward.1} parent=1 // pred_check
      _
    $region3: #{actor_forward.1} parent=1 // pred_check_branch
      %12 = sbr.rel (0) target = $region5
    $region4: #{actor_forward.1} parent=1 // pred_region
      _
    $region5: #{actor_forward.1} parent=1 // pred_fallthru
      _
    // Predicated region
    $region6: #{actor_forward.1} parent=1 // pred_check
      _
    $region7: #{actor_forward.1} parent=1 // pred_check_branch
      %14 = sbr.rel (0) target = $region9
    $region8: #{actor_forward.1} parent=1 // pred_region
      _
    $region9: #{actor_forward.1} parent=1 // pred_fallthru
      _
    // Predicated region
    $region10: #{actor_forward.1} parent=1 // pred_check
      _
    $region11: #{actor_forward.1} parent=1 // pred_check_branch
      %16 = sbr.rel (0) target = $region13
    $region12: #{actor_forward.1} parent=1 // pred_region
      _
    $region13: #{actor_forward.1} parent=1 // pred_fallthru
      _
    // Predicated region
    $region14: #{actor_forward.1} parent=1 // pred_check
      _
    $region15: #{actor_forward.1} parent=1 // pred_check_branch
      %18 = sbr.rel (0) target = $region17
    $region16: #{actor_forward.1} parent=1 // pred_region
      _
    $region17: #{actor_forward.1} parent=1 // pred_fallthru
      _
    // Predicated region
    $region18: #{actor_forward.1} parent=1 // pred_check
      _
    $region19: #{actor_forward.1} parent=1 // pred_check_branch
      %20 = sbr.rel (0) target = $region21
    $region20: #{actor_forward.1} parent=1 // pred_region
      %s22 = ssub.s32 128, 128
      %23 = vsyncadd [#allocation3], %s22
      %s25 = sshll.u32 [#allocation2], 4
      %s26 = int_to_ptr.vmem [resolvable:$true] %s25
      %28 = dma.hbm_to_vmem [thread:$0]  %s4, 128, %s26, [#allocation3]
    $region21: #{actor_forward.1} parent=1 // pred_fallthru
      _
    // Predicated region
    $region22: #{actor_forward.1} parent=1 // pred_check
      _
    $region23: #{actor_forward.1} parent=1 // pred_check_branch
      %30 = sbr.rel (0) target = $region25
    $region24: #{actor_forward.1} parent=1 // pred_region
      %31 = dma.done [#allocation3], 128
    $region25: #{actor_forward.1} parent=1 // pred_fallthru
      _
    %v32 = vld [vmem:[%s0] sm:$0xff]
    %v33 = vld [vmem:[%s1] sm:$0xff]
    %v34 = vld [vmem:[%s1 + $0x8] sm:$0xff]
    %v35 = vld [vmem:[%s2] sm:$0xff]
    %v36 = vld [vmem:[%s2 + $0x8] sm:$0xff]
    %v37 = vld [vmem:[%s2 + $0x10] sm:$0xff]
    %v38 = vld [vmem:[%s2 + $0x18] sm:$0xff]
    %v39 = vld [vmem:[%s3] sm:$0xff]
    %v40 = vld [vmem:[%s3 + $0x8] sm:$0xff]
    %v41 = vld [vmem:[%s3 + $0x10] sm:$0xff]
    %v42 = vld [vmem:[%s3 + $0x18] sm:$0xff]
    %v43 = vld [vmem:[#allocation2] sm:$0x1]
    %v44 = vld [vmem:[#allocation2 + $0x1] sm:$0x1]
    %v45 = vld [vmem:[#allocation2 + $0x2] sm:$0x1]
    %v46 = vld [vmem:[#allocation2 + $0x3] sm:$0x1]
    %v47 = vld [vmem:[#allocation2 + $0x4] sm:$0x1]
    %v48 = vld [vmem:[#allocation2 + $0x5] sm:$0x1]
    %v49 = vld [vmem:[#allocation2 + $0x6] sm:$0x1]
    %v50 = vld [vmem:[#allocation2 + $0x7] sm:$0x1]
    %vm51 = vcmp.gt.f32.partialorder %v50, 0.5
    %v52 = vlaneseq
    %v53 = vshrl.u32 %v52, 7
    %v54 = vsub.s32 0, %v53
    %v55 = vrot.slane %v43, %v54
    %vm56 = vcmask 130048
    %v58 = vsel %vm56, %v32, 0
    %60 = vmatprep.subr.mxu0 0.0
    %61 = vmatpush1.msra.mxu0 %v33
    %62 = vmatprep.subr.mxu0 0.0
    %63 = vmatpush1.msra.mxu0 %v34
    %64 = vmatprep.subr.mxu0 0.0
    %65 = vmatpush1.msra.mxu0 0.0
    %66 = vmatprep.subr.mxu0 0.0
    %67 = vmatpush1.msra.mxu0 0.0
    %68 = vmatprep.subr.mxu0 0.0
    %69 = vmatpush1.msra.mxu0 0.0
    %70 = vmatprep.subr.mxu0 0.0
    %71 = vmatpush1.msra.mxu0 0.0
    %72 = vmatprep.subr.mxu0 0.0
    %73 = vmatpush1.msra.mxu0 0.0
    %74 = vmatprep.subr.mxu0 0.0
    %75 = vmatpush1.msra.mxu0 0.0
    %76 = vmatprep.subr.mxu0 0.0
    %77 = vmatpush1.msra.mxu0 0.0
    %78 = vmatprep.subr.mxu0 0.0
    %79 = vmatpush1.msra.mxu0 0.0
    %80 = vmatprep.subr.mxu0 0.0
    %81 = vmatpush1.msra.mxu0 0.0
    %82 = vmatprep.subr.mxu0 0.0
    %83 = vmatpush1.msra.mxu0 0.0
    %84 = vmatprep.subr.mxu0 0.0
    %85 = vmatpush1.msra.mxu0 0.0
    %86 = vmatprep.subr.mxu0 0.0
    %87 = vmatpush1.msra.mxu0 0.0
    %88 = vmatprep.subr.mxu0 0.0
    %89 = vmatpush1.msra.mxu0 0.0
    %90 = vmatprep.subr.mxu0 0.0
    %91 = vmatpush1.msra.mxu0 0.0
    %92 = vmatprep.subr.mxu0 0.0
    %93 = vmatpush1.msra.mxu0 0.0
    %94 = vmatprep.subr.mxu0 0.0
    %95 = vmatpush1.msra.mxu0 0.0
    %96 = vmatprep.subr.mxu0 0.0
    %97 = vmatpush1.msra.mxu0 0.0
    %98 = vmatprep.subr.mxu0 0.0
    %99 = vmatpush1.msra.mxu0 0.0
    %100 = vmatprep.subr.mxu0 0.0
    %101 = vmatpush1.msra.mxu0 0.0
    %102 = vmatprep.subr.mxu0 0.0
    %103 = vmatpush1.msra.mxu0 0.0
    %104 = vmatprep.subr.mxu0 0.0
    %105 = vmatpush1.msra.mxu0 0.0
    %106 = vmatprep.subr.mxu0 0.0
    %107 = vmatpush1.msra.mxu0 0.0
    %108 = vmatprep.subr.mxu0 0.0
    %109 = vmatpush1.msra.mxu0 0.0
    %110 = vmatprep.subr.mxu0 0.0
    %111 = vmatpush1.msra.mxu0 0.0
    %112 = vmatprep.subr.mxu0 0.0
    %113 = vmatpush1.msra.mxu0 0.0
    %114 = vmatprep.subr.mxu0 0.0
    %115 = vmatpush1.msra.mxu0 0.0
    %116 = vmatprep.subr.mxu0 0.0
    %117 = vmatpush1.msra.mxu0 0.0
    %118 = vmatprep.subr.mxu0 0.0
    %119 = vmatpush1.msra.mxu0 0.0
    %120 = vmatprep.subr.mxu0 0.0
    %121 = vmatpush1.msra.mxu0 0.0
    %122 = vmatprep.subr.mxu0 0.0
    %123 = vmatpush1.msra.mxu0 0.0
    %124 = vmatprep.mubr.f32.mxu0 0.0
    %125 = vmatmul.mubr.f32.gmra.mrb[0].mxu0 %v58
    %v126 = vpop.f32.mrb[0].mxu0
    %v127 = vadd.f32 %v55, %v126
    %v128 = vpop.f32.mrb[0].mxu0
    %129 = vdwg.mxu0
    %vm130 = vcmask 261120
    %v131 = vsel %vm130, %v127, 0.0
    %132 = vadd.xlane.f32.xlu0 %v131
    %v133 = vpop.xlane.xlu0 %132
    %v134 = vrcp.pop 32.0
    %v135 = vmul.f32 %v133, %v134
    %v136 = vsub.f32 %v127, %v135
    %v137 = vmul.f32 %v136, %v136
    %v138 = vsel %vm130, %v137, 0.0
    %139 = vadd.xlane.f32.xlu0 %v138
    %v140 = vpop.xlane.xlu0 %139
    %v141 = vmul.f32 %v140, %v134
    %v142 = vadd.f32 %v141, 1e-05
    %v143 = vrsqrt.pop %v142
    %v144 = vmul.f32 %v136, %v143
    %v145 = vlaneseq
    %v146 = vshrl.u32 %v145, 7
    %v147 = vsub.s32 0, %v146
    %v148 = vrot.slane %v44, %v147
    %v149 = vmul.f32 %v144, %v148
    %v150 = vlaneseq
    %v151 = vshrl.u32 %v150, 7
    %v152 = vsub.s32 0, %v151
    %v153 = vrot.slane %v45, %v152
    %v154 = vadd.f32 %v149, %v153
    %v155 = vmax.f32 %v154, 0.0
    %v156 = vlaneseq
    %v157 = vshrl.u32 %v156, 7
    %v158 = vsub.s32 0, %v157
    %v159 = vrot.slane %v46, %v158
    %v161 = vsel %vm130, %v155, 0
    %163 = vmatprep.subr.mxu0 0.0
    %164 = vmatpush1.msra.mxu0 %v35
    %165 = vmatprep.subr.mxu0 0.0
    %166 = vmatpush1.msra.mxu0 %v36
    %167 = vmatprep.subr.mxu0 0.0
    %168 = vmatpush1.msra.mxu0 %v37
    %169 = vmatprep.subr.mxu0 0.0
    %170 = vmatpush1.msra.mxu0 %v38
    %171 = vmatprep.subr.mxu0 0.0
    %172 = vmatpush1.msra.mxu0 0.0
    %173 = vmatprep.subr.mxu0 0.0
    %174 = vmatpush1.msra.mxu0 0.0
    %175 = vmatprep.subr.mxu0 0.0
    %176 = vmatpush1.msra.mxu0 0.0
    %177 = vmatprep.subr.mxu0 0.0
    %178 = vmatpush1.msra.mxu0 0.0
    %179 = vmatprep.subr.mxu0 0.0
    %180 = vmatpush1.msra.mxu0 0.0
    %181 = vmatprep.subr.mxu0 0.0
    %182 = vmatpush1.msra.mxu0 0.0
    %183 = vmatprep.subr.mxu0 0.0
    %184 = vmatpush1.msra.mxu0 0.0
    %185 = vmatprep.subr.mxu0 0.0
    %186 = vmatpush1.msra.mxu0 0.0
    %187 = vmatprep.subr.mxu0 0.0
    %188 = vmatpush1.msra.mxu0 0.0
    %189 = vmatprep.subr.mxu0 0.0
    %190 = vmatpush1.msra.mxu0 0.0
    %191 = vmatprep.subr.mxu0 0.0
    %192 = vmatpush1.msra.mxu0 0.0
    %193 = vmatprep.subr.mxu0 0.0
    %194 = vmatpush1.msra.mxu0 0.0
    %195 = vmatprep.subr.mxu0 0.0
    %196 = vmatpush1.msra.mxu0 0.0
    %197 = vmatprep.subr.mxu0 0.0
    %198 = vmatpush1.msra.mxu0 0.0
    %199 = vmatprep.subr.mxu0 0.0
    %200 = vmatpush1.msra.mxu0 0.0
    %201 = vmatprep.subr.mxu0 0.0
    %202 = vmatpush1.msra.mxu0 0.0
    %203 = vmatprep.subr.mxu0 0.0
    %204 = vmatpush1.msra.mxu0 0.0
    %205 = vmatprep.subr.mxu0 0.0
    %206 = vmatpush1.msra.mxu0 0.0
    %207 = vmatprep.subr.mxu0 0.0
    %208 = vmatpush1.msra.mxu0 0.0
    %209 = vmatprep.subr.mxu0 0.0
    %210 = vmatpush1.msra.mxu0 0.0
    %211 = vmatprep.subr.mxu0 0.0
    %212 = vmatpush1.msra.mxu0 0.0
    %213 = vmatprep.subr.mxu0 0.0
    %214 = vmatpush1.msra.mxu0 0.0
    %215 = vmatprep.subr.mxu0 0.0
    %216 = vmatpush1.msra.mxu0 0.0
    %217 = vmatprep.subr.mxu0 0.0
    %218 = vmatpush1.msra.mxu0 0.0
    %219 = vmatprep.subr.mxu0 0.0
    %220 = vmatpush1.msra.mxu0 0.0
    %221 = vmatprep.subr.mxu0 0.0
    %222 = vmatpush1.msra.mxu0 0.0
    %223 = vmatprep.subr.mxu0 0.0
    %224 = vmatpush1.msra.mxu0 0.0
    %225 = vmatprep.subr.mxu0 0.0
    %226 = vmatpush1.msra.mxu0 0.0
    %227 = vmatprep.mubr.f32.mxu0 0.0
    %228 = vmatmul.mubr.f32.gmra.mrb[0].mxu0 %v161
    %v229 = vpop.f32.mrb[0].mxu0
    %v230 = vadd.f32 %v159, %v229
    %v231 = vpop.f32.mrb[0].mxu0
    %232 = vdwg.mxu0
    %v233 = vsel %vm130, %v230, 0.0
    %234 = vadd.xlane.f32.xlu0 %v233
    %v235 = vpop.xlane.xlu0 %234
    %v236 = vmul.f32 %v235, %v134
    %v237 = vsub.f32 %v230, %v236
    %v238 = vmul.f32 %v237, %v237
    %v239 = vsel %vm130, %v238, 0.0
    %240 = vadd.xlane.f32.xlu0 %v239
    %v241 = vpop.xlane.xlu0 %240
    %v242 = vmul.f32 %v241, %v134
    %v243 = vadd.f32 %v242, 1e-05
    %v244 = vrsqrt.pop %v243
    %v245 = vmul.f32 %v237, %v244
    %v246 = vlaneseq
    %v247 = vshrl.u32 %v246, 7
    %v248 = vsub.s32 0, %v247
    %v249 = vrot.slane %v47, %v248
    %v250 = vmul.f32 %v245, %v249
    %v251 = vlaneseq
    %v252 = vshrl.u32 %v251, 7
    %v253 = vsub.s32 0, %v252
    %v254 = vrot.slane %v48, %v253
    %v255 = vadd.f32 %v250, %v254
    %v256 = vmax.f32 %v255, 0.0
    %v257 = vlaneseq
    %v258 = vshrl.u32 %v257, 7
    %v259 = vsub.s32 0, %v258
    %v260 = vrot.slane %v49, %v259
    %v262 = vsel %vm130, %v256, 0
    %264 = vmatprep.subr.mxu0 0.0
    %265 = vmatpush1.msra.mxu0 %v39
    %266 = vmatprep.subr.mxu0 0.0
    %267 = vmatpush1.msra.mxu0 %v40
    %268 = vmatprep.subr.mxu0 0.0
    %269 = vmatpush1.msra.mxu0 %v41
    %270 = vmatprep.subr.mxu0 0.0
    %271 = vmatpush1.msra.mxu0 %v42
    %272 = vmatprep.subr.mxu0 0.0
    %273 = vmatpush1.msra.mxu0 0.0
    %274 = vmatprep.subr.mxu0 0.0
    %275 = vmatpush1.msra.mxu0 0.0
    %276 = vmatprep.subr.mxu0 0.0
    %277 = vmatpush1.msra.mxu0 0.0
    %278 = vmatprep.subr.mxu0 0.0
    %279 = vmatpush1.msra.mxu0 0.0
    %280 = vmatprep.subr.mxu0 0.0
    %281 = vmatpush1.msra.mxu0 0.0
    %282 = vmatprep.subr.mxu0 0.0
    %283 = vmatpush1.msra.mxu0 0.0
    %284 = vmatprep.subr.mxu0 0.0
    %285 = vmatpush1.msra.mxu0 0.0
    %286 = vmatprep.subr.mxu0 0.0
    %287 = vmatpush1.msra.mxu0 0.0
    %288 = vmatprep.subr.mxu0 0.0
    %289 = vmatpush1.msra.mxu0 0.0
    %290 = vmatprep.subr.mxu0 0.0
    %291 = vmatpush1.msra.mxu0 0.0
    %292 = vmatprep.subr.mxu0 0.0
    %293 = vmatpush1.msra.mxu0 0.0
    %294 = vmatprep.subr.mxu0 0.0
    %295 = vmatpush1.msra.mxu0 0.0
    %296 = vmatprep.subr.mxu0 0.0
    %297 = vmatpush1.msra.mxu0 0.0
    %298 = vmatprep.subr.mxu0 0.0
    %299 = vmatpush1.msra.mxu0 0.0
    %300 = vmatprep.subr.mxu0 0.0
    %301 = vmatpush1.msra.mxu0 0.0
    %302 = vmatprep.subr.mxu0 0.0
    %303 = vmatpush1.msra.mxu0 0.0
    %304 = vmatprep.subr.mxu0 0.0
    %305 = vmatpush1.msra.mxu0 0.0
    %306 = vmatprep.subr.mxu0 0.0
    %307 = vmatpush1.msra.mxu0 0.0
    %308 = vmatprep.subr.mxu0 0.0
    %309 = vmatpush1.msra.mxu0 0.0
    %310 = vmatprep.subr.mxu0 0.0
    %311 = vmatpush1.msra.mxu0 0.0
    %312 = vmatprep.subr.mxu0 0.0
    %313 = vmatpush1.msra.mxu0 0.0
    %314 = vmatprep.subr.mxu0 0.0
    %315 = vmatpush1.msra.mxu0 0.0
    %316 = vmatprep.subr.mxu0 0.0
    %317 = vmatpush1.msra.mxu0 0.0
    %318 = vmatprep.subr.mxu0 0.0
    %319 = vmatpush1.msra.mxu0 0.0
    %320 = vmatprep.subr.mxu0 0.0
    %321 = vmatpush1.msra.mxu0 0.0
    %322 = vmatprep.subr.mxu0 0.0
    %323 = vmatpush1.msra.mxu0 0.0
    %324 = vmatprep.subr.mxu0 0.0
    %325 = vmatpush1.msra.mxu0 0.0
    %326 = vmatprep.subr.mxu0 0.0
    %327 = vmatpush1.msra.mxu0 0.0
    %328 = vmatprep.mubr.f32.mxu0 0.0
    %329 = vmatmul.mubr.f32.gmra.mrb[0].mxu0 %v262
    %v330 = vpop.f32.mrb[0].mxu0
    %v331 = vadd.f32 %v260, %v330
    %v332 = vpop.f32.mrb[0].mxu0
    %333 = vdwg.mxu0
    %v334 = vmax.f32 %v331, -20.0
    %v335 = vmin.f32 %v334, 2.0
    %v336 = vmul.f32 %v335, 1.442695
    %v337 = vpow.pop %v336
    %v338 = vsel %vm51, 1, 0
    %v339 = vlaneseq
    %v340 = vshrl.u32 %v339, 7
    %v341 = vsub.s32 0, %v340
    %v342 = vrot.slane %v338, %v341
    %vm343 = vcmp.eq.s32.totalorder %v342, 1
    %v344 = vsel %vm343, %v337, %v331
    %345 = vst.msk [vmem:[%s5] sm:$0xff] %vm56, %v344
    // Predicated region
    $region26: #{actor_forward.1} parent=1 // pred_check
      _
    $region27: #{actor_forward.1} parent=1 // pred_check_branch
      %347 = sbr.rel (0) target = $region29
    $region28: #{actor_forward.1} parent=1 // pred_region
      _
    $region29: #{actor_forward.1} parent=1 // pred_fallthru
      _
    // Predicated region
    $region30: #{actor_forward.1} parent=1 // pred_check
      _
    $region31: #{actor_forward.1} parent=1 // pred_check_branch
      %349 = sbr.rel (0) target = $region33
    $region32: #{actor_forward.1} parent=1 // pred_region
      _
    $region33: #{actor_forward.1} parent=1 // pred_fallthru
      _
    %350 = vsyncpa [#allocation3], 1

</llo_original>
